<compile_context>
chip_gen: v6e
topology: v6e:2x2x1
jax: 0.10.0
libtpu: 0.0.40
codegen_flags: <defaults>
</compile_context>

<pallas_src>
import math

import jax
import jax.numpy as jnp
from jax import lax
from jax.experimental import pallas as pl
from jax.experimental.pallas import tpu as pltpu

N = 64   # nodes
D = 32   # input feature dim
K = 8    # clusters

_SELU_ALPHA = 1.6732632423543772
_SELU_SCALE = 1.0507009873554805


def dmon_kernel(feat_ref, adj_ref, w_ref, b_ref,
                pooled_ref, assign_ref, losses_ref):
    x = feat_ref[...]                     # (N, D) f32
    adj = adj_ref[...]                    # (N, N) f32
    w = w_ref[...]                        # (K, D) f32
    b = b_ref[...]                        # (K, 1) f32

    # transform = Linear(d -> k) (+ Dropout(p=0) == identity), softmax over
    # clusters. Work in transposed (K, N) layout: logits^T = W X^T + b.
    logits_t = lax.dot_general(w, x, (((1,), (1,)), ((), ())),
                               preferred_element_type=jnp.float32) + b   # (K, N)
    m = jnp.max(logits_t, axis=0, keepdims=True)                         # (1, N)
    e = jnp.exp(logits_t - m)                                            # (K, N)
    inv_den = pl.reciprocal(jnp.sum(e, axis=0, keepdims=True),
                            approx=False)                                # (1, N)
    c_t = e * inv_den                                                    # (K, N) = C^T

    # assignments output keeps the module's (n, k) contract.
    assign_ref[...] = jnp.transpose(c_t)                                 # (N, K)

    # (A C)^T : contract C^T's N axis with the adjacency's column axis.
    ac_t = lax.dot_general(c_t, adj, (((1,), (1,)), ((), ())),
                           preferred_element_type=jnp.float32)           # (K, N)

    num_edges = jnp.sum(adj)                    # == sum of column degrees
    inv_two_m = 1.0 / (2.0 * num_edges)         # single scalar, reused twice

    # spectral (modularity) loss: -trace(C^T A C - C^T d d^T C / 2m) / 2m
    trace_graph_pooled = jnp.sum(ac_t * c_t)                   # trace(C^T A C)
    dtc = jnp.sum(ac_t, axis=1, keepdims=True)                 # (K,1) = d^T C (colsum identity)
    trace_normalizer = jnp.sum(dtc * dtc) * inv_two_m
    spectral_loss = -(trace_graph_pooled - trace_normalizer) * inv_two_m

    # cluster sizes and collapse regularizer: ||sizes|| / n * sqrt(k) - 1
    sizes = jnp.sum(c_t, axis=1, keepdims=True)                # (K, 1)
    inv_sizes = pl.reciprocal(sizes, approx=False)             # (K, 1)
    collapse_loss = (jnp.sqrt(jnp.sum(sizes * sizes))
                     * jnp.float32(math.sqrt(K) / N) - 1.0)

    losses_ref[0] = spectral_loss
    losses_ref[1] = collapse_loss

    # pooled cluster representations: SELU( diag(1/sizes) C^T F ) -> (K, D)
    pooled = lax.dot_general(c_t, x, (((1,), (0,)), ((), ())),
                             preferred_element_type=jnp.float32) * inv_sizes
    pooled_ref[...] = _SELU_SCALE * jnp.where(
        pooled > 0.0, pooled, _SELU_ALPHA * (jnp.exp(pooled) - 1.0))


def dmon_forward(features, adjacency, weight, bias):
    vmem = pl.BlockSpec(memory_space=pltpu.MemorySpace.VMEM)
    smem = pl.BlockSpec(memory_space=pltpu.MemorySpace.SMEM)
    bias_col = bias.reshape(K, 1)
    return pl.pallas_call(
        dmon_kernel,
        out_shape=(
            jax.ShapeDtypeStruct((K, D), jnp.float32),   # pooled features
            jax.ShapeDtypeStruct((N, K), jnp.float32),   # assignments
            jax.ShapeDtypeStruct((2,), jnp.float32),     # [spectral, collapse]
        ),
        in_specs=[vmem, vmem, vmem, vmem],
        out_specs=(vmem, vmem, smem),
    )(features, adjacency, weight, bias_col)


def dmon_reference(features, adjacency, weight, bias):
    logits = features @ weight.T + bias
    assignments = jax.nn.softmax(logits, axis=1)
    cluster_sizes = assignments.sum(axis=0)
    assignments_pooling = assignments / cluster_sizes
    degrees = adjacency.sum(axis=0)[:, None]
    num_edges = degrees.sum()
    graph_pooled = (adjacency @ assignments).T @ assignments
    normalizer = (assignments.T @ degrees) @ (degrees.T @ assignments) / 2.0 / num_edges
    spectral_loss = -jnp.trace(graph_pooled - normalizer) / 2.0 / num_edges
    collapse_loss = (jnp.linalg.norm(cluster_sizes) / features.shape[0]
                     * jnp.sqrt(jnp.float32(K)) - 1.0)
    pooled = jax.nn.selu(assignments_pooling.T @ features)
    return pooled, assignments, spectral_loss, collapse_loss


def make_params(key):
    # Deterministic orthogonal init for the (K, D) linear weight (rows
    # orthonormal since K < D), mirroring nn.init.orthogonal_; zero bias.
    g = jax.random.normal(key, (D, K), dtype=jnp.float32)
    q, r = jnp.linalg.qr(g)
    q = q * jnp.sign(jnp.diagonal(r))
    weight = q.T.astype(jnp.float32)                  # (K, D)
    bias = jnp.zeros((K,), dtype=jnp.float32)
    return weight, bias


if __name__ == "__main__":
    key = jax.random.PRNGKey(0)
    k_feat, k_adj, k_w = jax.random.split(key, 3)

    features = jax.random.normal(k_feat, (N, D), dtype=jnp.float32)

    # Symmetric binary adjacency with empty diagonal (dense stand-in for the
    # sparse graph adjacency).
    upper = (jax.random.uniform(k_adj, (N, N)) < 0.15).astype(jnp.float32)
    upper = jnp.triu(upper, k=1)
    adjacency = upper + upper.T

    weight, bias = make_params(k_w)

    pooled, assignments, losses = jax.block_until_ready(
        dmon_forward(features, adjacency, weight, bias))

    ref_pooled, ref_assign, ref_spec, ref_col = dmon_reference(
        features, adjacency, weight, bias)

    assert pooled.shape == (K, D) and assignments.shape == (N, K)
    assert jnp.allclose(pooled, ref_pooled, atol=1e-4, rtol=1e-4)
    assert jnp.allclose(assignments, ref_assign, atol=1e-5, rtol=1e-5)
    assert jnp.allclose(losses[0], ref_spec, atol=1e-4, rtol=1e-4)
    assert jnp.allclose(losses[1], ref_col, atol=1e-4, rtol=1e-4)

    print("KERNEL_OK")
</pallas_src>

<mosaic_0001>
module attributes {stable_mosaic.version = 11 : i64} {
  func.func @dmon_kernel(%arg0: memref<64x32xf32, #tpu.memory_space<vmem>>, %arg1: memref<64x64xf32, #tpu.memory_space<vmem>>, %arg2: memref<8x32xf32, #tpu.memory_space<vmem>>, %arg3: memref<8x1xf32, #tpu.memory_space<vmem>>, %arg4: memref<8x32xf32, #tpu.memory_space<vmem>>, %arg5: memref<64x8xf32, #tpu.memory_space<vmem>>, %arg6: memref<2xf32, #tpu.memory_space<smem>>) attributes {dimension_semantics = [], scalar_prefetch = 0 : i64, scratch_operands = 0 : i64, tpu.core_type = #tpu.core_type<tc>} {
    %c0 = arith.constant 0 : index
    %c0_0 = arith.constant 0 : index
    %0 = vector.load %arg0[%c0, %c0_0] : memref<64x32xf32, #tpu.memory_space<vmem>>, vector<64x32xf32>
    %c0_1 = arith.constant 0 : index
    %c0_2 = arith.constant 0 : index
    %1 = vector.load %arg1[%c0_1, %c0_2] : memref<64x64xf32, #tpu.memory_space<vmem>>, vector<64x64xf32>
    %c0_3 = arith.constant 0 : index
    %c0_4 = arith.constant 0 : index
    %2 = vector.load %arg2[%c0_3, %c0_4] : memref<8x32xf32, #tpu.memory_space<vmem>>, vector<8x32xf32>
    %c0_5 = arith.constant 0 : index
    %c0_6 = arith.constant 0 : index
    %3 = vector.load %arg3[%c0_5, %c0_6] : memref<8x1xf32, #tpu.memory_space<vmem>>, vector<8x1xf32>
    %cst = arith.constant dense<0.000000e+00> : vector<8x64xf32>
    %4 = tpu.matmul %2, %0, %cst {dimension_numbers = #tpu.dot_dimension_numbers<[1], [1], [0], [0], [0, 0, 1, 0], [], []>} : vector<8x32xf32>, vector<64x32xf32>, vector<8x64xf32> -> vector<8x64xf32>
    %5 = vector.broadcast %3 : vector<8x1xf32> to vector<8x64xf32>
    %6 = arith.addf %4, %5 : vector<8x64xf32>
    %cst_7 = arith.constant dense<0xFF800000> : vector<64xf32>
    %7 = vector.multi_reduction <maximumf>, %6, %cst_7 [0] : vector<8x64xf32> to vector<64xf32>
    %8 = vector.shape_cast %7 : vector<64xf32> to vector<1x64xf32>
    %9 = vector.broadcast %8 : vector<1x64xf32> to vector<8x64xf32>
    %10 = arith.subf %6, %9 : vector<8x64xf32>
    %11 = math.exp %10 : vector<8x64xf32>
    %cst_8 = arith.constant dense<0.000000e+00> : vector<64xf32>
    %12 = vector.multi_reduction <add>, %11, %cst_8 [0] : vector<8x64xf32> to vector<64xf32>
    %13 = vector.shape_cast %12 : vector<64xf32> to vector<1x64xf32>
    %14 = tpu.reciprocal %13 : vector<1x64xf32> -> vector<1x64xf32>
    %15 = vector.broadcast %14 : vector<1x64xf32> to vector<8x64xf32>
    %16 = arith.mulf %11, %15 : vector<8x64xf32>
    %17 = tpu.transpose %16, [1, 0] : vector<8x64xf32> -> vector<64x8xf32>
    %c0_9 = arith.constant 0 : index
    %c0_10 = arith.constant 0 : index
    %18 = vector.load %arg5[%c0_9, %c0_10] : memref<64x8xf32, #tpu.memory_space<vmem>>, vector<64x8xf32>
    tpu.vector_store %arg5[%c0_9, %c0_10], %17 {strides = array<i32>} : memref<64x8xf32, #tpu.memory_space<vmem>>, vector<64x8xf32>,
    %cst_11 = arith.constant dense<0.000000e+00> : vector<8x64xf32>
    %19 = tpu.matmul %16, %1, %cst_11 {dimension_numbers = #tpu.dot_dimension_numbers<[1], [1], [0], [0], [0, 0, 1, 0], [], []>} : vector<8x64xf32>, vector<64x64xf32>, vector<8x64xf32> -> vector<8x64xf32>
    %20 = vector.shape_cast %1 : vector<64x64xf32> to vector<1x64x64xf32>
    %cst_12 = arith.constant dense<0.000000e+00> : vector<1xf32>
    %21 = vector.multi_reduction <add>, %20, %cst_12 [1, 2] : vector<1x64x64xf32> to vector<1xf32>
    %22 = vector.shape_cast %21 : vector<1xf32> to vector<1x1x1xf32>
    %23 = vector.extract %22[0, 0, 0] : f32 from vector<1x1x1xf32>
    %cst_13 = arith.constant 2.000000e+00 : f32
    %24 = arith.mulf %cst_13, %23 : f32
    %cst_14 = arith.constant 1.000000e+00 : f32
    %25 = arith.divf %cst_14, %24 : f32
    %26 = arith.mulf %19, %16 : vector<8x64xf32>
    %27 = vector.shape_cast %26 : vector<8x64xf32> to vector<1x8x64xf32>
    %cst_15 = arith.constant dense<0.000000e+00> : vector<1xf32>
    %28 = vector.multi_reduction <add>, %27, %cst_15 [1, 2] : vector<1x8x64xf32> to vector<1xf32>
    %29 = vector.shape_cast %28 : vector<1xf32> to vector<1x1x1xf32>
    %30 = vector.extract %29[0, 0, 0] : f32 from vector<1x1x1xf32>
    %cst_16 = arith.constant dense<0.000000e+00> : vector<8xf32>
    %31 = vector.multi_reduction <add>, %19, %cst_16 [1] : vector<8x64xf32> to vector<8xf32>
    %32 = vector.shape_cast %31 : vector<8xf32> to vector<8x1xf32>
    %33 = arith.mulf %32, %32 : vector<8x1xf32>
    %34 = vector.shape_cast %33 : vector<8x1xf32> to vector<1x8x1xf32>
    %cst_17 = arith.constant dense<0.000000e+00> : vector<1xf32>
    %35 = vector.multi_reduction <add>, %34, %cst_17 [1, 2] : vector<1x8x1xf32> to vector<1xf32>
    %36 = vector.shape_cast %35 : vector<1xf32> to vector<1x1x1xf32>
    %37 = vector.extract %36[0, 0, 0] : f32 from vector<1x1x1xf32>
    %38 = arith.mulf %37, %25 : f32
    %39 = arith.subf %30, %38 : f32
    %cst_18 = arith.constant 0.000000e+00 : f32
    %40 = arith.subf %cst_18, %39 : f32
    %41 = arith.mulf %40, %25 : f32
    %cst_19 = arith.constant dense<0.000000e+00> : vector<8xf32>
    %42 = vector.multi_reduction <add>, %16, %cst_19 [1] : vector<8x64xf32> to vector<8xf32>
    %43 = vector.shape_cast %42 : vector<8xf32> to vector<8x1xf32>
    %44 = tpu.reciprocal %43 : vector<8x1xf32> -> vector<8x1xf32>
    %45 = arith.mulf %43, %43 : vector<8x1xf32>
    %46 = vector.shape_cast %45 : vector<8x1xf32> to vector<1x8x1xf32>
    %cst_20 = arith.constant dense<0.000000e+00> : vector<1xf32>
    %47 = vector.multi_reduction <add>, %46, %cst_20 [1, 2] : vector<1x8x1xf32> to vector<1xf32>
    %48 = vector.shape_cast %47 : vector<1xf32> to vector<1x1x1xf32>
    %49 = vector.extract %48[0, 0, 0] : f32 from vector<1x1x1xf32>
    %50 = math.sqrt %49 : f32
    %cst_21 = arith.constant 0.0441941731 : f32
    %51 = arith.mulf %50, %cst_21 : f32
    %cst_22 = arith.constant 1.000000e+00 : f32
    %52 = arith.subf %51, %cst_22 : f32
    %c0_23 = arith.constant 0 : index
    %53 = memref.load %arg6[%c0_23] : memref<2xf32, #tpu.memory_space<smem>>
    memref.store %41, %arg6[%c0_23] : memref<2xf32, #tpu.memory_space<smem>>
    %c1 = arith.constant 1 : index
    %54 = memref.load %arg6[%c1] : memref<2xf32, #tpu.memory_space<smem>>
    memref.store %52, %arg6[%c1] : memref<2xf32, #tpu.memory_space<smem>>
    %cst_24 = arith.constant dense<0.000000e+00> : vector<8x32xf32>
    %55 = tpu.matmul %16, %0, %cst_24 {dimension_numbers = #tpu.dot_dimension_numbers<[1], [0], [0], [1], [0, 0, 1, 1], [], []>} : vector<8x64xf32>, vector<64x32xf32>, vector<8x32xf32> -> vector<8x32xf32>
    %56 = vector.broadcast %44 : vector<8x1xf32> to vector<8x32xf32>
    %57 = arith.mulf %55, %56 : vector<8x32xf32>
    %cst_25 = arith.constant 0.000000e+00 : f32
    %58 = vector.broadcast %cst_25 : f32 to vector<8x32xf32>
    %59 = arith.cmpf ogt, %57, %58 : vector<8x32xf32>
    %60 = math.exp %57 : vector<8x32xf32>
    %cst_26 = arith.constant 1.000000e+00 : f32
    %61 = vector.broadcast %cst_26 : f32 to vector<8x32xf32>
    %62 = arith.subf %60, %61 : vector<8x32xf32>
    %cst_27 = arith.constant 1.67326319 : f32
    %63 = vector.broadcast %cst_27 : f32 to vector<8x32xf32>
    %64 = arith.mulf %63, %62 : vector<8x32xf32>
    %65 = arith.select %59, %57, %64 : vector<8x32xi1>, vector<8x32xf32>
    %cst_28 = arith.constant 1.05070102 : f32
    %66 = vector.broadcast %cst_28 : f32 to vector<8x32xf32>
    %67 = arith.mulf %66, %65 : vector<8x32xf32>
    %c0_29 = arith.constant 0 : index
    %c0_30 = arith.constant 0 : index
    %68 = vector.load %arg4[%c0_29, %c0_30] : memref<8x32xf32, #tpu.memory_space<vmem>>, vector<8x32xf32>
    tpu.vector_store %arg4[%c0_29, %c0_30], %67 {strides = array<i32>} : memref<8x32xf32, #tpu.memory_space<vmem>>, vector<8x32xf32>,
    return
  }
}

</mosaic_0001>

<llo_original>
// kernel: tpu_custom_call.1
$region0: #{tpu_custom_call.1}
  #allocation0 [shape = 'u32[]', space=smem, size = 0x4, offset = 0x4, fixed_abs, tag = 'smem constant byte address 0x4 - core index']
  #allocation1 [shape = 'u32[144,128]{1,0:T(1,128)}', space=vmem, size = 0x12000, scoped, tag = 'internal scratch']
  %s0 = inlined_call_operand.vmem [shape: f32[64,32], index: 0, kind: input, shape index: {}]
  %s1 = inlined_call_operand.vmem [shape: f32[64,64], index: 1, kind: input, shape index: {}]
  %s2 = inlined_call_operand.vmem [shape: f32[8,32], index: 2, kind: input, shape index: {}]
  %s3 = inlined_call_operand.vmem [shape: f32[8,1], index: 3, kind: input, shape index: {}]
  %s4 = inlined_call_operand.hbm [shape: f32[8,32], index: 4, kind: output, shape index: {0}]
  %s5 = inlined_call_operand.vmem [shape: f32[64,8], index: 5, kind: output, shape index: {1}]
  %s6 = inlined_call_operand.hbm [shape: f32[2], index: 6, kind: output, shape index: {2}]
  %7 = xla_tuple %s4, %s5, %s6
  %s8 = sld [smem:[#allocation0]]
  $region42: #{tpu_custom_call.1} parent=0
    _
  %s10 = ssub.s32 1, %s8
  %s11 = scalar_select 0, %s10, %s8
  $region1: #{tpu_custom_call.1} parent=0
    #allocation2 [shape = 'u8[4096]{0}', space=vmem, size = 0x1000, scoped, tag = 'output window, operand 0, single buffered']
    #allocation3 [shape = 's32[1]{0}', space=sflag, size = 0x4, scoped, tag = 'scoped memory for tpu_custom_call.1']
    #allocation4 [shape = 's32[1]{0}', space=sflag, size = 0x4, scoped, tag = 'scoped memory for tpu_custom_call.1']
    #allocation5 [shape = 'u8[512]{0}', space=smem, size = 0x200, scoped, tag = 'output window, operand 2, single buffered']
    %12 = vsyncpa [#allocation3], 0
    %13 = vsyncpa [#allocation4], 0
    // Predicated region
    $region2: #{tpu_custom_call.1} parent=1 // pred_check
      _
    $region3: #{tpu_custom_call.1} parent=1 // pred_check_branch
      %15 = sbr.rel (0) target = $region5
    $region4: #{tpu_custom_call.1} parent=1 // pred_region
      _
    $region5: #{tpu_custom_call.1} parent=1 // pred_fallthru
      _
    // Predicated region
    $region6: #{tpu_custom_call.1} parent=1 // pred_check
      _
    $region7: #{tpu_custom_call.1} parent=1 // pred_check_branch
      %17 = sbr.rel (0) target = $region9
    $region8: #{tpu_custom_call.1} parent=1 // pred_region
      _
    $region9: #{tpu_custom_call.1} parent=1 // pred_fallthru
      _
    // Predicated region
    $region10: #{tpu_custom_call.1} parent=1 // pred_check
      _
    $region11: #{tpu_custom_call.1} parent=1 // pred_check_branch
      %19 = sbr.rel (0) target = $region13
    $region12: #{tpu_custom_call.1} parent=1 // pred_region
      _
    $region13: #{tpu_custom_call.1} parent=1 // pred_fallthru
      _
    // Predicated region
    $region14: #{tpu_custom_call.1} parent=1 // pred_check
      _
    $region15: #{tpu_custom_call.1} parent=1 // pred_check_branch
      %21 = sbr.rel (0) target = $region17
    $region16: #{tpu_custom_call.1} parent=1 // pred_region
      _
    $region17: #{tpu_custom_call.1} parent=1 // pred_fallthru
      _
    %v22 = vld [vmem:[%s0] sm:$0xff]
    %v23 = vld [vmem:[%s0 + $0x8] sm:$0xff]
    %v24 = vld [vmem:[%s0 + $0x10] sm:$0xff]
    %v25 = vld [vmem:[%s0 + $0x18] sm:$0xff]
    %v26 = vld [vmem:[%s0 + $0x20] sm:$0xff]
    %v27 = vld [vmem:[%s0 + $0x28] sm:$0xff]
    %v28 = vld [vmem:[%s0 + $0x30] sm:$0xff]
    %v29 = vld [vmem:[%s0 + $0x38] sm:$0xff]
    %v30 = vld [vmem:[%s1] sm:$0xff]
    %v31 = vld [vmem:[%s1 + $0x8] sm:$0xff]
    %v32 = vld [vmem:[%s1 + $0x10] sm:$0xff]
    %v33 = vld [vmem:[%s1 + $0x18] sm:$0xff]
    %v34 = vld [vmem:[%s1 + $0x20] sm:$0xff]
    %v35 = vld [vmem:[%s1 + $0x28] sm:$0xff]
    %v36 = vld [vmem:[%s1 + $0x30] sm:$0xff]
    %v37 = vld [vmem:[%s1 + $0x38] sm:$0xff]
    %v38 = vld [vmem:[%s2] sm:$0xff]
    %v39 = vld [vmem:[%s3] sm:$0xff]
    %41 = vset.pattern.permute.xlu0 0
    %42 = vperm.xlu0 %41, %v39
    %v43 = vpop.permute.xlu0 %42
    %vm45 = vcmask 261120
    %v47 = vsel %vm45, %v38, 0
    %v50 = vsel %vm45, %v22, 0
    %v53 = vsel %vm45, %v23, 0
    %v56 = vsel %vm45, %v24, 0
    %v59 = vsel %vm45, %v25, 0
    %v62 = vsel %vm45, %v26, 0
    %v65 = vsel %vm45, %v27, 0
    %v68 = vsel %vm45, %v28, 0
    %v71 = vsel %vm45, %v29, 0
    %73 = vmatprep.subr.mxu0 0.0
    %74 = vmatpush1.xpose.msra.mxu0 0.0
    %75 = vmatprep.subr.mxu0 0.0
    %76 = vmatpush1.xpose.msra.mxu0 0.0
    %77 = vmatprep.subr.mxu0 0.0
    %78 = vmatpush1.xpose.msra.mxu0 0.0
    %79 = vmatprep.subr.mxu0 0.0
    %80 = vmatpush1.xpose.msra.mxu0 0.0
    %81 = vmatprep.subr.mxu0 0.0
    %82 = vmatpush1.xpose.msra.mxu0 0.0
    %83 = vmatprep.subr.mxu0 0.0
    %84 = vmatpush1.xpose.msra.mxu0 0.0
    %85 = vmatprep.subr.mxu0 0.0
    %86 = vmatpush1.xpose.msra.mxu0 0.0
    %87 = vmatprep.subr.mxu0 0.0
    %88 = vmatpush1.xpose.msra.mxu0 0.0
    %89 = vmatprep.subr.mxu0 0.0
    %90 = vmatpush1.xpose.msra.mxu0 %v71
    %91 = vmatprep.subr.mxu0 0.0
    %92 = vmatpush1.xpose.msra.mxu0 %v68
    %93 = vmatprep.subr.mxu0 0.0
    %94 = vmatpush1.xpose.msra.mxu0 %v65
    %95 = vmatprep.subr.mxu0 0.0
    %96 = vmatpush1.xpose.msra.mxu0 %v62
    %97 = vmatprep.subr.mxu0 0.0
    %98 = vmatpush1.xpose.msra.mxu0 %v59
    %99 = vmatprep.subr.mxu0 0.0
    %100 = vmatpush1.xpose.msra.mxu0 %v56
    %101 = vmatprep.subr.mxu0 0.0
    %102 = vmatpush1.xpose.msra.mxu0 %v53
    %103 = vmatprep.subr.mxu0 0.0
    %104 = vmatpush1.xpose.msra.mxu0 %v50
    %105 = vmatprep.subr.mxu0 0.0
    %106 = vmatpush2.xpose.msra.mxu0 0.0
    %107 = vmatprep.subr.mxu0 0.0
    %108 = vmatpush2.xpose.msra.mxu0 0.0
    %109 = vmatprep.subr.mxu0 0.0
    %110 = vmatpush2.xpose.msra.mxu0 0.0
    %111 = vmatprep.subr.mxu0 0.0
    %112 = vmatpush2.xpose.msra.mxu0 0.0
    %113 = vmatprep.subr.mxu0 0.0
    %114 = vmatpush2.xpose.msra.mxu0 0.0
    %115 = vmatprep.subr.mxu0 0.0
    %116 = vmatpush2.xpose.msra.mxu0 0.0
    %117 = vmatprep.subr.mxu0 0.0
    %118 = vmatpush2.xpose.msra.mxu0 0.0
    %119 = vmatprep.subr.mxu0 0.0
    %120 = vmatpush2.xpose.msra.mxu0 0.0
    %121 = vmatprep.subr.mxu0 0.0
    %122 = vmatpush2.xpose.msra.mxu0 0.0
    %123 = vmatprep.subr.mxu0 0.0
    %124 = vmatpush2.xpose.msra.mxu0 0.0
    %125 = vmatprep.subr.mxu0 0.0
    %126 = vmatpush2.xpose.msra.mxu0 0.0
    %127 = vmatprep.subr.mxu0 0.0
    %128 = vmatpush2.xpose.msra.mxu0 0.0
    %129 = vmatprep.subr.mxu0 0.0
    %130 = vmatpush2.xpose.msra.mxu0 0.0
    %131 = vmatprep.subr.mxu0 0.0
    %132 = vmatpush2.xpose.msra.mxu0 0.0
    %133 = vmatprep.subr.mxu0 0.0
    %134 = vmatpush2.xpose.msra.mxu0 0.0
    %135 = vmatprep.subr.mxu0 0.0
    %136 = vmatpush2.xpose.msra.mxu0 0.0
    %137 = vmatprep.mubr.f32.mxu0 0.0
    %138 = vmatmul.mubr.f32.gmra.mxu0 %v47
    %v139 = vpop.f32.mrf.mxu0
    %v140 = vadd.f32 %v43, %v139
    %v141 = vpop.f32.mrf.mxu0
    %142 = vdwg.mxu0
    %vm143 = vcmask 523264
    %v144 = vsel %vm143, %v140, -inf
    %v145 = vrot.slane %v144, 4
    %v146 = vmax.f32 %v144, %v145
    %v147 = vrot.slane %v146, 2
    %v148 = vmax.f32 %v146, %v147
    %v149 = vrot.slane %v148, 1
    %v150 = vmax.f32 %v148, %v149
    %v151 = vsub.f32 %v140, %v150
    %v152 = vmul.f32 %v151, 1.442695
    %v153 = vpow.pop %v152
    %v154 = vsel %vm143, %v153, 0.0
    %v155 = vrot.slane %v154, 4
    %v156 = vadd.f32 %v154, %v155
    %v157 = vrot.slane %v156, 2
    %v158 = vadd.f32 %v156, %v157
    %v159 = vrot.slane %v158, 1
    %v160 = vadd.f32 %v158, %v159
    %v161 = vrcp.pop %v160
    %v162 = vmul.f32 %v153, %v161
    %163 = vxpose.xlu0.b32.start [1/16] %v162, 128
    %164 = vxpose.xlu0.b32.cont [2/16] 0.0, 128
    %165 = vxpose.xlu0.b32.cont [3/16] 0.0, 128
    %166 = vxpose.xlu0.b32.cont [4/16] 0.0, 128
    %167 = vxpose.xlu0.b32.cont [5/16] 0.0, 128
    %168 = vxpose.xlu0.b32.cont [6/16] 0.0, 128
    %169 = vxpose.xlu0.b32.cont [7/16] 0.0, 128
    %170 = vxpose.xlu0.b32.cont [8/16] 0.0, 128
    %171 = vxpose.xlu0.b32.cont [9/16] 0.0, 128
    %172 = vxpose.xlu0.b32.cont [10/16] 0.0, 128
    %173 = vxpose.xlu0.b32.cont [11/16] 0.0, 128
    %174 = vxpose.xlu0.b32.cont [12/16] 0.0, 128
    %175 = vxpose.xlu0.b32.cont [13/16] 0.0, 128
    %176 = vxpose.xlu0.b32.cont [14/16] 0.0, 128
    %177 = vxpose.xlu0.b32.cont [15/16] 0.0, 128
    %178 = vxpose.xlu0.b32.end [16/16] 0.0, 128
    %v179 = vpop.trf.xlu0
    %v180 = vpop.trf.xlu0
    %v181 = vpop.trf.xlu0
    %v182 = vpop.trf.xlu0
    %v183 = vpop.trf.xlu0
    %v184 = vpop.trf.xlu0
    %v185 = vpop.trf.xlu0
    %v186 = vpop.trf.xlu0
    %v187 = vpop.trf.xlu0
    %v188 = vpop.trf.xlu0
    %v189 = vpop.trf.xlu0
    %v190 = vpop.trf.xlu0
    %v191 = vpop.trf.xlu0
    %v192 = vpop.trf.xlu0
    %v193 = vpop.trf.xlu0
    %v194 = vpop.trf.xlu0
    %vm195 = vcmask 64512
    %196 = vst.msk [vmem:[%s5] sm:$0xff] %vm195, %v179
    %197 = vst.msk [vmem:[%s5 + $0x8] sm:$0xff] %vm195, %v180
    %198 = vst.msk [vmem:[%s5 + $0x10] sm:$0xff] %vm195, %v181
    %199 = vst.msk [vmem:[%s5 + $0x18] sm:$0xff] %vm195, %v182
    %200 = vst.msk [vmem:[%s5 + $0x20] sm:$0xff] %vm195, %v183
    %201 = vst.msk [vmem:[%s5 + $0x28] sm:$0xff] %vm195, %v184
    %202 = vst.msk [vmem:[%s5 + $0x30] sm:$0xff] %vm195, %v185
    %203 = vst.msk [vmem:[%s5 + $0x38] sm:$0xff] %vm195, %v186
    %v205 = vsel %vm143, %v162, 0
    %v208 = vsel %vm143, %v30, 0
    %v211 = vsel %vm143, %v31, 0
    %v214 = vsel %vm143, %v32, 0
    %v217 = vsel %vm143, %v33, 0
    %v220 = vsel %vm143, %v34, 0
    %v223 = vsel %vm143, %v35, 0
    %v226 = vsel %vm143, %v36, 0
    %v229 = vsel %vm143, %v37, 0
    %231 = vmatprep.subr.mxu0 0.0
    %232 = vmatpush1.xpose.msra.mxu0 0.0
    %233 = vmatprep.subr.mxu0 0.0
    %234 = vmatpush1.xpose.msra.mxu0 0.0
    %235 = vmatprep.subr.mxu0 0.0
    %236 = vmatpush1.xpose.msra.mxu0 0.0
    %237 = vmatprep.subr.mxu0 0.0
    %238 = vmatpush1.xpose.msra.mxu0 0.0
    %239 = vmatprep.subr.mxu0 0.0
    %240 = vmatpush1.xpose.msra.mxu0 0.0
    %241 = vmatprep.subr.mxu0 0.0
    %242 = vmatpush1.xpose.msra.mxu0 0.0
    %243 = vmatprep.subr.mxu0 0.0
    %244 = vmatpush1.xpose.msra.mxu0 0.0
    %245 = vmatprep.subr.mxu0 0.0
    %246 = vmatpush1.xpose.msra.mxu0 0.0
    %247 = vmatprep.subr.mxu0 0.0
    %248 = vmatpush1.xpose.msra.mxu0 %v229
    %249 = vmatprep.subr.mxu0 0.0
    %250 = vmatpush1.xpose.msra.mxu0 %v226
    %251 = vmatprep.subr.mxu0 0.0
    %252 = vmatpush1.xpose.msra.mxu0 %v223
    %253 = vmatprep.subr.mxu0 0.0
    %254 = vmatpush1.xpose.msra.mxu0 %v220
    %255 = vmatprep.subr.mxu0 0.0
    %256 = vmatpush1.xpose.msra.mxu0 %v217
    %257 = vmatprep.subr.mxu0 0.0
    %258 = vmatpush1.xpose.msra.mxu0 %v214
    %259 = vmatprep.subr.mxu0 0.0
    %260 = vmatpush1.xpose.msra.mxu0 %v211
    %261 = vmatprep.subr.mxu0 0.0
    %262 = vmatpush1.xpose.msra.mxu0 %v208
    %263 = vmatprep.subr.mxu0 0.0
    %264 = vmatpush2.xpose.msra.mxu0 0.0
    %265 = vmatprep.subr.mxu0 0.0
    %266 = vmatpush2.xpose.msra.mxu0 0.0
    %267 = vmatprep.subr.mxu0 0.0
    %268 = vmatpush2.xpose.msra.mxu0 0.0
    %269 = vmatprep.subr.mxu0 0.0
    %270 = vmatpush2.xpose.msra.mxu0 0.0
    %271 = vmatprep.subr.mxu0 0.0
    %272 = vmatpush2.xpose.msra.mxu0 0.0
    %273 = vmatprep.subr.mxu0 0.0
    %274 = vmatpush2.xpose.msra.mxu0 0.0
    %275 = vmatprep.subr.mxu0 0.0
    %276 = vmatpush2.xpose.msra.mxu0 0.0
    %277 = vmatprep.subr.mxu0 0.0
    %278 = vmatpush2.xpose.msra.mxu0 0.0
    %279 = vmatprep.subr.mxu0 0.0
    %280 = vmatpush2.xpose.msra.mxu0 0.0
    %281 = vmatprep.subr.mxu0 0.0
    %282 = vmatpush2.xpose.msra.mxu0 0.0
    %283 = vmatprep.subr.mxu0 0.0
    %284 = vmatpush2.xpose.msra.mxu0 0.0
    %285 = vmatprep.subr.mxu0 0.0
    %286 = vmatpush2.xpose.msra.mxu0 0.0
    %287 = vmatprep.subr.mxu0 0.0
    %288 = vmatpush2.xpose.msra.mxu0 0.0
    %289 = vmatprep.subr.mxu0 0.0
    %290 = vmatpush2.xpose.msra.mxu0 0.0
    %291 = vmatprep.subr.mxu0 0.0
    %292 = vmatpush2.xpose.msra.mxu0 0.0
    %293 = vmatprep.subr.mxu0 0.0
    %294 = vmatpush2.xpose.msra.mxu0 0.0
    %295 = vmatprep.mubr.f32.mxu0 0.0
    %296 = vmatmul.mubr.f32.gmra.mxu0 %v205
    %v297 = vpop.f32.mrf.mxu0
    %v298 = vadd.f32 0.0, %v297
    %v299 = vpop.f32.mrf.mxu0
    %300 = vdwg.mxu0
    %v301 = vsel %vm143, %v30, 0.0
    %v302 = vsel %vm143, %v31, 0.0
    %v303 = vadd.f32 %v301, %v302
    %v304 = vsel %vm143, %v32, 0.0
    %v305 = vadd.f32 %v303, %v304
    %v306 = vsel %vm143, %v33, 0.0
    %v307 = vadd.f32 %v305, %v306
    %v308 = vsel %vm143, %v34, 0.0
    %v309 = vadd.f32 %v307, %v308
    %v310 = vsel %vm143, %v35, 0.0
    %v311 = vadd.f32 %v309, %v310
    %v312 = vsel %vm143, %v36, 0.0
    %v313 = vadd.f32 %v311, %v312
    %v314 = vsel %vm143, %v37, 0.0
    %v315 = vadd.f32 %v313, %v314
    %316 = vadd.xlane.f32.xlu0 %v315
    %v317 = vpop.xlane.xlu0 %316
    %v318 = vrot.slane %v317, 4
    %v319 = vadd.f32 %v317, %v318
    %v320 = vrot.slane %v319, 2
    %v321 = vadd.f32 %v319, %v320
    %v322 = vrot.slane %v321, 1
    %v323 = vadd.f32 %v321, %v322
    %s324 = vtos %v323
    %s325 = smul.f32 %s324, 2.0
    %v326 = vstv %s325
    %v327 = vrcp.pop %v326
    %s328 = vtos %v327
    %v329 = vmul.f32 %v298, %v162
    %v330 = vsel %vm143, %v329, 0.0
    %331 = vadd.xlane.f32.xlu0 %v330
    %v332 = vpop.xlane.xlu0 %331
    %v333 = vrot.slane %v332, 4
    %v334 = vadd.f32 %v332, %v333
    %v335 = vrot.slane %v334, 2
    %v336 = vadd.f32 %v334, %v335
    %v337 = vrot.slane %v336, 1
    %v338 = vadd.f32 %v336, %v337
    %s339 = vtos %v338
    %v340 = vsel %vm143, %v298, 0.0
    %341 = vadd.xlane.f32.xlu0 %v340
    %v342 = vpop.xlane.xlu0 %341
    %v343 = vmul.f32 %v342, %v342
    %vm344 = vcmask 7168
    %v345 = vsel %vm344, %v343, 0.0
    %346 = vadd.xlane.f32.xlu0 %v345
    %v347 = vpop.xlane.xlu0 %346
    %v348 = vrot.slane %v347, 4
    %v349 = vadd.f32 %v347, %v348
    %v350 = vrot.slane %v349, 2
    %v351 = vadd.f32 %v349, %v350
    %v352 = vrot.slane %v351, 1
    %v353 = vadd.f32 %v351, %v352
    %s354 = vtos %v353
    %s355 = smul.f32 %s354, %s328
    %s356 = ssub.f32 %s339, %s355
    %s357 = ssub.f32 0.0, %s356
    %s358 = smul.f32 %s357, %s328
    %v359 = vsel %vm143, %v162, 0.0
    %360 = vadd.xlane.f32.xlu0 %v359
    %v361 = vpop.xlane.xlu0 %360
    %v362 = vrcp.pop %v361
    %v363 = vmul.f32 %v361, %v361
    %v364 = vsel %vm344, %v363, 0.0
    %365 = vadd.xlane.f32.xlu0 %v364
    %v366 = vpop.xlane.xlu0 %365
    %v367 = vrot.slane %v366, 4
    %v368 = vadd.f32 %v366, %v367
    %v369 = vrot.slane %v368, 2
    %v370 = vadd.f32 %v368, %v369
    %v371 = vrot.slane %v370, 1
    %v372 = vadd.f32 %v370, %v371
    %s373 = vtos %v372
    %v374 = vstv %s373
    %v375 = vrsqrt.pop %v374
    %v376 = vmul.f32 %v374, %v375
    %vm377 = vcmp.eq.f32.partialorder %v374, inf
    %v378 = vsel %vm377, %v374, %v376
    %vm379 = vcmp.eq.f32.partialorder %v374, 0.0
    %v380 = vand.u32 %v374, 2147483648
    %v381 = vsel %vm379, %v380, %v378
    %s382 = vtos %v381
    %s383 = smul.f32 %s382, 0.044194173
    %s384 = ssub.f32 %s383, 1.0
    %s385 = scalar_lea.smem [#allocation5], 0
    %386 = sst [smem:[%s385]] %s358
    %s387 = scalar_lea.smem [#allocation5], 1
    %388 = sst [smem:[%s387]] %s384
    %389 = vmatprep.subr.mxu0 0.0
    %390 = vmatpush1.msra.mxu0 0.0
    %391 = vmatprep.subr.mxu0 0.0
    %392 = vmatpush1.msra.mxu0 0.0
    %393 = vmatprep.subr.mxu0 0.0
    %394 = vmatpush1.msra.mxu0 0.0
    %395 = vmatprep.subr.mxu0 0.0
    %396 = vmatpush1.msra.mxu0 0.0
    %397 = vmatprep.subr.mxu0 0.0
    %398 = vmatpush1.msra.mxu0 0.0
    %399 = vmatprep.subr.mxu0 0.0
    %400 = vmatpush1.msra.mxu0 0.0
    %401 = vmatprep.subr.mxu0 0.0
    %402 = vmatpush1.msra.mxu0 0.0
    %403 = vmatprep.subr.mxu0 0.0
    %404 = vmatpush1.msra.mxu0 0.0
    %405 = vmatprep.subr.mxu0 0.0
    %406 = vmatpush1.msra.mxu0 %v29
    %407 = vmatprep.subr.mxu0 0.0
    %408 = vmatpush1.msra.mxu0 %v28
    %409 = vmatprep.subr.mxu0 0.0
    %410 = vmatpush1.msra.mxu0 %v27
    %411 = vmatprep.subr.mxu0 0.0
    %412 = vmatpush1.msra.mxu0 %v26
    %413 = vmatprep.subr.mxu0 0.0
    %414 = vmatpush1.msra.mxu0 %v25
    %415 = vmatprep.subr.mxu0 0.0
    %416 = vmatpush1.msra.mxu0 %v24
    %417 = vmatprep.subr.mxu0 0.0
    %418 = vmatpush1.msra.mxu0 %v23
    %419 = vmatprep.subr.mxu0 0.0
    %420 = vmatpush1.msra.mxu0 %v22
    %421 = vmatprep.subr.mxu0 0.0
    %422 = vmatpush2.msra.mxu0 0.0
    %423 = vmatprep.subr.mxu0 0.0
    %424 = vmatpush2.msra.mxu0 0.0
    %425 = vmatprep.subr.mxu0 0.0
    %426 = vmatpush2.msra.mxu0 0.0
    %427 = vmatprep.subr.mxu0 0.0
    %428 = vmatpush2.msra.mxu0 0.0
    %429 = vmatprep.subr.mxu0 0.0
    %430 = vmatpush2.msra.mxu0 0.0
    %431 = vmatprep.subr.mxu0 0.0
    %432 = vmatpush2.msra.mxu0 0.0
    %433 = vmatprep.subr.mxu0 0.0
    %434 = vmatpush2.msra.mxu0 0.0
    %435 = vmatprep.subr.mxu0 0.0
    %436 = vmatpush2.msra.mxu0 0.0
    %437 = vmatprep.subr.mxu0 0.0
    %438 = vmatpush2.msra.mxu0 0.0
    %439 = vmatprep.subr.mxu0 0.0
    %440 = vmatpush2.msra.mxu0 0.0
    %441 = vmatprep.subr.mxu0 0.0
    %442 = vmatpush2.msra.mxu0 0.0
    %443 = vmatprep.subr.mxu0 0.0
    %444 = vmatpush2.msra.mxu0 0.0
    %445 = vmatprep.subr.mxu0 0.0
    %446 = vmatpush2.msra.mxu0 0.0
    %447 = vmatprep.subr.mxu0 0.0
    %448 = vmatpush2.msra.mxu0 0.0
    %449 = vmatprep.subr.mxu0 0.0
    %450 = vmatpush2.msra.mxu0 0.0
    %451 = vmatprep.subr.mxu0 0.0
    %452 = vmatpush2.msra.mxu0 0.0
    %453 = vmatprep.mubr.f32.mxu0 0.0
    %454 = vmatmul.mubr.f32.gmra.mxu0 %v205
    %v455 = vpop.f32.mrf.mxu0
    %v456 = vadd.f32 0.0, %v455
    %v457 = vpop.f32.mrf.mxu0
    %458 = vdwg.mxu0
    %v459 = vmul.f32 %v456, %v362
    %vm460 = vcmp.gt.f32.partialorder %v459, 0.0
    %v461 = vmul.f32 %v459, 1.442695
    %v462 = vpow.pop %v461
    %v463 = vsub.f32 %v462, 1.0
    %v464 = vmul.f32 %v463, 1.6732632
    %v465 = vsel %vm460, %v459, %v464
    %v466 = vmul.f32 %v465, 1.050701
    %467 = vst.msk [vmem:[#allocation2] sm:$0xff] %vm45, %v466
    // Predicated region
    $region18: #{tpu_custom_call.1} parent=1 // pred_check
      _
    $region19: #{tpu_custom_call.1} parent=1 // pred_check_branch
      %469 = sbr.rel (0) target = $region21
    $region20: #{tpu_custom_call.1} parent=1 // pred_region
      %s471 = ssub.s32 128, 128
      %472 = vsyncadd [#allocation3], %s471
      %s474 = sshll.u32 [#allocation2], 4
      %s475 = int_to_ptr.vmem [resolvable:$true] %s474
      %477 = dma.vmem_to_hbm [thread:$0]  %s475, 128, %s4, [#allocation3]
    $region21: #{tpu_custom_call.1} parent=1 // pred_fallthru
      _
    // Predicated region
    $region22: #{tpu_custom_call.1} parent=1 // pred_check
      _
    $region23: #{tpu_custom_call.1} parent=1 // pred_check_branch
      %479 = sbr.rel (0) target = $region25
    $region24: #{tpu_custom_call.1} parent=1 // pred_region
      _
    $region25: #{tpu_custom_call.1} parent=1 // pred_fallthru
      _
    // Predicated region
    $region26: #{tpu_custom_call.1} parent=1 // pred_check
      _
    $region27: #{tpu_custom_call.1} parent=1 // pred_check_branch
      %481 = sbr.rel (0) target = $region29
    $region28: #{tpu_custom_call.1} parent=1 // pred_region
      %s483 = ssub.s32 16, 16
      %484 = vsyncadd [#allocation4], %s483
      %487 = dma.smem_to_hbm [#allocation5], 16, %s6, [#allocation4]
    $region29: #{tpu_custom_call.1} parent=1 // pred_fallthru
      _
    // Predicated region
    $region30: #{tpu_custom_call.1} parent=1 // pred_check
      _
    $region31: #{tpu_custom_call.1} parent=1 // pred_check_branch
      %489 = sbr.rel (0) target = $region33
    $region32: #{tpu_custom_call.1} parent=1 // pred_region
      %490 = dma.done [#allocation3], 128
    $region33: #{tpu_custom_call.1} parent=1 // pred_fallthru
      _
    // Predicated region
    $region34: #{tpu_custom_call.1} parent=1 // pred_check
      _
    $region35: #{tpu_custom_call.1} parent=1 // pred_check_branch
      %492 = sbr.rel (0) target = $region37
    $region36: #{tpu_custom_call.1} parent=1 // pred_region
      _
    $region37: #{tpu_custom_call.1} parent=1 // pred_fallthru
      _
    // Predicated region
    $region38: #{tpu_custom_call.1} parent=1 // pred_check
      _
    $region39: #{tpu_custom_call.1} parent=1 // pred_check_branch
      %494 = sbr.rel (0) target = $region41
    $region40: #{tpu_custom_call.1} parent=1 // pred_region
      %495 = dma.done [#allocation4], 16
    $region41: #{tpu_custom_call.1} parent=1 // pred_fallthru
      _
    %496 = sfence
    %497 = vsyncpa [#allocation3], 1
    %498 = vsyncpa [#allocation4], 1

</llo_original>
